<compile_context>
chip_gen: v7x
topology: tpu7x:2x2x1
jax: 0.10.0
libtpu: 0.0.40
codegen_flags: <defaults>
</compile_context>

<pallas_src>
from itertools import chain
from itertools import combinations_with_replacement as combinations_w_r

import numpy as np
import jax
import jax.numpy as jnp
from jax.experimental import pallas as pl
from jax.experimental.pallas import tpu as pltpu


def _round_up(n: int, m: int) -> int:
    return ((n + m - 1) // m) * m


def _combinations(n_features: int, degree: int):
    # matches Polynomial._combinations(interaction_only=False, include_bias=False)
    return list(
        chain.from_iterable(
            combinations_w_r(range(n_features), i) for i in range(1, degree + 1)
        )
    )


def make_polynomial_params(input_dim=10, output_dim=15, degree=2, seed=0):
    """Build kernel operands (padded, lane-aligned) + reference params."""
    combos = _combinations(input_dim, degree)
    F = len(combos)
    F_pad = _round_up(F, 128)
    O_pad = _round_up(output_dim, 128)

    # Pad every combination to `degree` factor slots; sentinel == input_dim means "1".
    idx = np.full((F, degree), input_dim, dtype=np.int32)
    for k, c in enumerate(combos):
        for j, ci in enumerate(c):
            idx[k, j] = ci

    # One-hot selection matrix (all degree slots concatenated along lanes).  The
    # constant "ones" factors can only occur in slots d >= 1 (every combination has at
    # least one real feature), so C_rest only carries degree-1 slots.
    S_cat = np.zeros((input_dim, degree * F_pad), dtype=np.float32)
    C_rest = np.zeros((1, max(degree - 1, 1) * F_pad), dtype=np.float32)
    for d in range(degree):
        for k in range(F):
            if idx[k, d] < input_dim:
                S_cat[idx[k, d], d * F_pad + k] = 1.0
            elif d >= 1:
                C_rest[0, (d - 1) * F_pad + k] = 1.0
    # Padded feature columns (k >= F) stay all-zero in every degree slot -> feats == 0
    # there, and the matching rows of W_pad are zero, so they contribute nothing.

    # nn.Linear(F, output_dim) deterministic init (uniform, PyTorch-default-like).
    key = jax.random.PRNGKey(seed)
    kw, kb = jax.random.split(key)
    bound = 1.0 / np.sqrt(F)
    W = jax.random.uniform(kw, (F, output_dim), jnp.float32, -bound, bound)
    b = jax.random.uniform(kb, (1, output_dim), jnp.float32, -bound, bound)

    W_pad = jnp.zeros((F_pad, O_pad), jnp.float32).at[:F, :output_dim].set(W)

    params = dict(
        S_cat=jnp.asarray(S_cat),
        C_rest=jnp.asarray(C_rest),
        W_pad=W_pad,
        b=jnp.asarray(b),
        degree=degree,
        input_dim=input_dim,
        output_dim=output_dim,
        F=F,
        F_pad=F_pad,
        O_pad=O_pad,
    )
    return params, (combos, W, b)


def _poly_kernel(x_ref, s_ref, c_ref, w_ref, b_ref, o_ref):
    # x_ref: [TB, D]            s_ref: [D, degree*F_pad]
    # c_ref: [1, (degree-1)*F_pad] (unused if degree == 1)
    # w_ref: [F_pad, O_pad]     b_ref: [1, output_dim]    o_ref: [TB, output_dim]
    F_pad = w_ref.shape[0]
    degree = s_ref.shape[1] // F_pad
    out_dim = o_ref.shape[1]

    # Single gather-as-matmul for all degree slots.
    y = jnp.dot(x_ref[...], s_ref[...], preferred_element_type=jnp.float32)

    # Elementwise product across degree slots; the constant-one factors are folded in
    # via the (degree-1)-slot constant row (static, 128-lane-aligned slices).
    feats = y[:, :F_pad]
    for d in range(1, degree):
        feats = feats * (
            y[:, d * F_pad:(d + 1) * F_pad] + c_ref[:, (d - 1) * F_pad:d * F_pad]
        )

    # Linear head: lane-dense matmul, then slice to the real output width so only
    # output_dim lanes go back to HBM.
    res = jnp.dot(feats, w_ref[...], preferred_element_type=jnp.float32)
    o_ref[...] = res[:, :out_dim] + b_ref[...]


def polynomial_forward(x, params, tile_b=2048):
    """x: [B, input_dim] float32 -> [B, output_dim] float32."""
    B, D = x.shape
    F_pad = params["F_pad"]
    O_pad = params["O_pad"]
    degree = params["degree"]
    output_dim = params["output_dim"]

    # Batch tile: multiple of 8 sublanes; capped so the grid has >= 2 tiles whenever B
    # allows it (lets the ("parallel",) axis split across both v7x TensorCores) and so
    # the VMEM footprint (~5 MiB at tb=2048) stays far under every generation's budget.
    tb = max(8, min(tile_b, _round_up(pl.cdiv(B, 2), 8)))
    num_tiles = pl.cdiv(B, tb)

    c_cols = params["C_rest"].shape[1]
    flops = 2 * B * (D * degree * F_pad + F_pad * O_pad)
    bytes_accessed = 4 * (
        B * (D + output_dim) + D * degree * F_pad + c_cols + F_pad * O_pad + output_dim
    )

    out = pl.pallas_call(
        _poly_kernel,
        out_shape=jax.ShapeDtypeStruct((B, output_dim), jnp.float32),
        grid=(num_tiles,),
        in_specs=[
            pl.BlockSpec((tb, D), lambda i: (i, 0)),                 # x: tiled over batch
            pl.BlockSpec((D, degree * F_pad), lambda i: (0, 0)),     # S_cat: resident
            pl.BlockSpec((1, c_cols), lambda i: (0, 0)),             # C_rest: resident
            pl.BlockSpec((F_pad, O_pad), lambda i: (0, 0)),          # W_pad: resident
            pl.BlockSpec((1, output_dim), lambda i: (0, 0)),         # b: resident
        ],
        out_specs=pl.BlockSpec((tb, output_dim), lambda i: (i, 0)),
        compiler_params=pltpu.CompilerParams(
            dimension_semantics=("parallel",),
            vmem_limit_bytes=32 * 1024 * 1024,
        ),
        cost_estimate=pl.CostEstimate(
            flops=flops, transcendentals=0, bytes_accessed=bytes_accessed
        ),
    )(x, params["S_cat"], params["C_rest"], params["W_pad"], params["b"])

    return out


def _reference_forward(x, combos, W, b):
    """Plain-JAX reference following the PyTorch module semantics exactly."""
    cols = []
    for c in combos:
        v = jnp.ones((x.shape[0],), x.dtype)
        for ci in c:
            v = v * x[:, ci]
        cols.append(v)
    A = jnp.stack(cols, axis=-1)  # [B, F], degree-grouped ordering as in the module
    return A @ W + b


if __name__ == "__main__":
    input_dim, output_dim, degree = 10, 15, 2

    params, (combos, W, b) = make_polynomial_params(input_dim, output_dim, degree)
    assert params["F"] == 65  # 10 singletons + 55 pairs-with-replacement

    key = jax.random.PRNGKey(0)

    # Small primary check (batch = 8).
    x = jax.random.normal(key, (8, input_dim), jnp.float32)
    out = jax.block_until_ready(polynomial_forward(x, params))
    ref = _reference_forward(x, combos, W, b)
    np.testing.assert_allclose(np.asarray(out), np.asarray(ref), rtol=1e-5, atol=1e-5)

    # Exercise the multi-tile + ragged-last-block path (B=300 not a multiple of tb=128).
    x2 = jax.random.normal(jax.random.fold_in(key, 1), (300, input_dim), jnp.float32)
    out2 = jax.block_until_ready(polynomial_forward(x2, params, tile_b=128))
    ref2 = _reference_forward(x2, combos, W, b)
    np.testing.assert_allclose(np.asarray(out2), np.asarray(ref2), rtol=1e-5, atol=1e-5)

    print("KERNEL_OK")
</pallas_src>

<mosaic_0001>
module attributes {stable_mosaic.version = 11 : i64} {
  func.func @_poly_kernel(%arg0: i32, %arg1: memref<8x10xf32, #tpu.memory_space<vmem>>, %arg2: memref<10x256xf32, #tpu.memory_space<vmem>>, %arg3: memref<1x128xf32, #tpu.memory_space<vmem>>, %arg4: memref<128x128xf32, #tpu.memory_space<vmem>>, %arg5: memref<1x15xf32, #tpu.memory_space<vmem>>, %arg6: memref<8x15xf32, #tpu.memory_space<vmem>>) attributes {dimension_semantics = [#tpu.dimension_semantics<parallel>], iteration_bounds = array<i64: 1>, scalar_prefetch = 0 : i64, scratch_operands = 0 : i64, tpu.core_type = #tpu.core_type<tc>, window_params = [{transform_indices = @transform_0, window_bounds = array<i64: 8, 10>}, {pipeline_mode = #tpu.pipeline_mode<synchronous>, transform_indices = @transform_1, window_bounds = array<i64: 10, 256>}, {pipeline_mode = #tpu.pipeline_mode<synchronous>, transform_indices = @transform_2, window_bounds = array<i64: 1, 128>}, {pipeline_mode = #tpu.pipeline_mode<synchronous>, transform_indices = @transform_3, window_bounds = array<i64: 128, 128>}, {pipeline_mode = #tpu.pipeline_mode<synchronous>, transform_indices = @transform_4, window_bounds = array<i64: 1, 15>}, {transform_indices = @transform_5, window_bounds = array<i64: 8, 15>}]} {
    %c0 = arith.constant 0 : index
    %c0_0 = arith.constant 0 : index
    %0 = vector.load %arg1[%c0, %c0_0] : memref<8x10xf32, #tpu.memory_space<vmem>>, vector<8x10xf32>
    %c0_1 = arith.constant 0 : index
    %c0_2 = arith.constant 0 : index
    %1 = vector.load %arg2[%c0_1, %c0_2] : memref<10x256xf32, #tpu.memory_space<vmem>>, vector<10x256xf32>
    %cst = arith.constant dense<0.000000e+00> : vector<8x256xf32>
    %2 = tpu.matmul %0, %1, %cst {dimension_numbers = #tpu.dot_dimension_numbers<[1], [0], [0], [1], [0, 0, 1, 1], [], []>} : vector<8x10xf32>, vector<10x256xf32>, vector<8x256xf32> -> vector<8x256xf32>
    %3 = vector.extract_strided_slice %2 {offsets = [0, 0], sizes = [8, 128], strides = [1, 1]} : vector<8x256xf32> to vector<8x128xf32>
    %4 = vector.extract_strided_slice %2 {offsets = [0, 128], sizes = [8, 128], strides = [1, 1]} : vector<8x256xf32> to vector<8x128xf32>
    %c0_3 = arith.constant 0 : index
    %c0_4 = arith.constant 0 : index
    %5 = vector.load %arg3[%c0_3, %c0_4] : memref<1x128xf32, #tpu.memory_space<vmem>>, vector<1x128xf32>
    %6 = vector.broadcast %5 : vector<1x128xf32> to vector<8x128xf32>
    %7 = arith.addf %4, %6 : vector<8x128xf32>
    %8 = arith.mulf %3, %7 : vector<8x128xf32>
    %c0_5 = arith.constant 0 : index
    %c0_6 = arith.constant 0 : index
    %9 = vector.load %arg4[%c0_5, %c0_6] : memref<128x128xf32, #tpu.memory_space<vmem>>, vector<128x128xf32>
    %cst_7 = arith.constant dense<0.000000e+00> : vector<8x128xf32>
    %10 = tpu.matmul %8, %9, %cst_7 {dimension_numbers = #tpu.dot_dimension_numbers<[1], [0], [0], [1], [0, 0, 1, 1], [], []>} : vector<8x128xf32>, vector<128x128xf32>, vector<8x128xf32> -> vector<8x128xf32>
    %11 = vector.extract_strided_slice %10 {offsets = [0, 0], sizes = [8, 15], strides = [1, 1]} : vector<8x128xf32> to vector<8x15xf32>
    %c0_8 = arith.constant 0 : index
    %c0_9 = arith.constant 0 : index
    %12 = vector.load %arg5[%c0_8, %c0_9] : memref<1x15xf32, #tpu.memory_space<vmem>>, vector<1x15xf32>
    %13 = vector.broadcast %12 : vector<1x15xf32> to vector<8x15xf32>
    %14 = arith.addf %11, %13 : vector<8x15xf32>
    %c0_10 = arith.constant 0 : index
    %c0_11 = arith.constant 0 : index
    %15 = vector.load %arg6[%c0_10, %c0_11] : memref<8x15xf32, #tpu.memory_space<vmem>>, vector<8x15xf32>
    tpu.vector_store %arg6[%c0_10, %c0_11], %14 {strides = array<i32>} : memref<8x15xf32, #tpu.memory_space<vmem>>, vector<8x15xf32>,
    return
  }
  func.func @transform_0(%arg0: i32) -> (i32, i32) {
    %c0_i32 = arith.constant 0 : i32
    %c0_i32_0 = arith.constant 0 : i32
    return %arg0, %c0_i32 : i32, i32
  }
  func.func @transform_1(%arg0: i32) -> (i32, i32) {
    %c0_i32 = arith.constant 0 : i32
    %c0_i32_0 = arith.constant 0 : i32
    %c0_i32_1 = arith.constant 0 : i32
    return %c0_i32, %c0_i32_0 : i32, i32
  }
  func.func @transform_2(%arg0: i32) -> (i32, i32) {
    %c0_i32 = arith.constant 0 : i32
    %c0_i32_0 = arith.constant 0 : i32
    %c0_i32_1 = arith.constant 0 : i32
    return %c0_i32, %c0_i32_0 : i32, i32
  }
  func.func @transform_3(%arg0: i32) -> (i32, i32) {
    %c0_i32 = arith.constant 0 : i32
    %c0_i32_0 = arith.constant 0 : i32
    %c0_i32_1 = arith.constant 0 : i32
    return %c0_i32, %c0_i32_0 : i32, i32
  }
  func.func @transform_4(%arg0: i32) -> (i32, i32) {
    %c0_i32 = arith.constant 0 : i32
    %c0_i32_0 = arith.constant 0 : i32
    %c0_i32_1 = arith.constant 0 : i32
    return %c0_i32, %c0_i32_0 : i32, i32
  }
  func.func @transform_5(%arg0: i32) -> (i32, i32) {
    %c0_i32 = arith.constant 0 : i32
    %c0_i32_0 = arith.constant 0 : i32
    return %arg0, %c0_i32 : i32, i32
  }
}

</mosaic_0001>

<llo_original>
// kernel: tpu_custom_call.1
$region0: #{tpu_custom_call.1}
  #allocation0 [shape = 'u32[]', space=smem, size = 0x4, offset = 0x4, fixed_abs, tag = 'smem constant byte address 0x4 - core index']
  #allocation1 [shape = 'u32[144,128]{1,0:T(1,128)}', space=vmem, size = 0x12000, scoped, tag = 'internal scratch']
  %s0 = inlined_call_operand.hbm [shape: f32[8,10], index: 0, kind: input, shape index: {}]
  %s1 = inlined_call_operand.hbm [shape: f32[10,256], index: 1, kind: input, shape index: {}]
  %s2 = inlined_call_operand.vmem [shape: f32[1,128], index: 2, kind: input, shape index: {}]
  %s3 = inlined_call_operand.hbm [shape: f32[128,128], index: 3, kind: input, shape index: {}]
  %s4 = inlined_call_operand.vmem [shape: f32[1,15], index: 4, kind: input, shape index: {}]
  %s5 = inlined_call_operand.hbm [shape: f32[8,15], index: 5, kind: output, shape index: {}]
  %s6 = sld [smem:[#allocation0]]
  $region42: #{tpu_custom_call.1} parent=0
    _
  %s8 = ssub.s32 1, %s6
  %s9 = scalar_select 0, %s8, %s6
  $region1: #{tpu_custom_call.1} parent=0
    #allocation2 [shape = 'u8[4096]{0}', space=vmem, size = 0x1000, scoped, tag = 'input window, operand 0, single buffered']
    #allocation3 [shape = 's32[1]{0}', space=sflag, size = 0x4, scoped, tag = 'scoped memory for tpu_custom_call.1']
    #allocation4 [shape = 's32[1]{0}', space=sflag, size = 0x4, scoped, tag = 'scoped memory for tpu_custom_call.1']
    #allocation5 [shape = 'u8[16384]{0}', space=vmem, size = 0x4000, scoped, tag = 'input window, operand 1, single buffered']
    #allocation6 [shape = 's32[1]{0}', space=sflag, size = 0x4, scoped, tag = 'scoped memory for tpu_custom_call.1']
    #allocation7 [shape = 'u8[65536]{0}', space=vmem, size = 0x10000, scoped, tag = 'input window, operand 3, single buffered']
    #allocation8 [shape = 'u8[4096]{0}', space=vmem, size = 0x1000, scoped, tag = 'output window, operand 0, single buffered']
    %10 = vsyncpa [#allocation3], 0
    %11 = vsyncpa [#allocation6], 0
    %12 = vsyncpa [#allocation4], 0
    // Predicated region
    $region2: #{tpu_custom_call.1} parent=1 // pred_check
      _
    $region3: #{tpu_custom_call.1} parent=1 // pred_check_branch
      %14 = sbr.rel (0) target = $region5
    $region4: #{tpu_custom_call.1} parent=1 // pred_region
      %s16 = ssub.s32 128, 128
      %17 = vsyncadd [#allocation3], %s16
      %s19 = sshll.u32 [#allocation2], 4
      %s20 = int_to_ptr.vmem [resolvable:$true] %s19
      %22 = dma.hbm_to_vmem [thread:$0]  %s0, 128, %s20, [#allocation3]
    $region5: #{tpu_custom_call.1} parent=1 // pred_fallthru
      _
    // Predicated region
    $region6: #{tpu_custom_call.1} parent=1 // pred_check
      _
    $region7: #{tpu_custom_call.1} parent=1 // pred_check_branch
      %24 = sbr.rel (0) target = $region9
    $region8: #{tpu_custom_call.1} parent=1 // pred_region
      %s26 = ssub.s32 512, 512
      %27 = vsyncadd [#allocation6], %s26
      %s28 = sshll.u32 [#allocation5], 4
      %s29 = int_to_ptr.vmem [resolvable:$true] %s28
      %34 = dma.hbm_to_vmem [thread:$0]  %s1, 512, %s29, [#allocation6], 256, 256, 16
    $region9: #{tpu_custom_call.1} parent=1 // pred_fallthru
      _
    // Predicated region
    $region10: #{tpu_custom_call.1} parent=1 // pred_check
      _
    $region11: #{tpu_custom_call.1} parent=1 // pred_check_branch
      %36 = sbr.rel (0) target = $region13
    $region12: #{tpu_custom_call.1} parent=1 // pred_region
      _
    $region13: #{tpu_custom_call.1} parent=1 // pred_fallthru
      _
    // Predicated region
    $region14: #{tpu_custom_call.1} parent=1 // pred_check
      _
    $region15: #{tpu_custom_call.1} parent=1 // pred_check_branch
      %38 = sbr.rel (0) target = $region17
    $region16: #{tpu_custom_call.1} parent=1 // pred_region
      %s40 = ssub.s32 2048, 2048
      %41 = vsyncadd [#allocation6], %s40
      %s42 = sshll.u32 [#allocation7], 4
      %s43 = int_to_ptr.vmem [resolvable:$true] %s42
      %48 = dma.hbm_to_vmem [thread:$0]  %s3, 2048, %s43, [#allocation6], 128, 128, 8
    $region17: #{tpu_custom_call.1} parent=1 // pred_fallthru
      _
    // Predicated region
    $region18: #{tpu_custom_call.1} parent=1 // pred_check
      _
    $region19: #{tpu_custom_call.1} parent=1 // pred_check_branch
      %50 = sbr.rel (0) target = $region21
    $region20: #{tpu_custom_call.1} parent=1 // pred_region
      _
    $region21: #{tpu_custom_call.1} parent=1 // pred_fallthru
      _
    // Predicated region
    $region22: #{tpu_custom_call.1} parent=1 // pred_check
      _
    $region23: #{tpu_custom_call.1} parent=1 // pred_check_branch
      %52 = sbr.rel (0) target = $region25
    $region24: #{tpu_custom_call.1} parent=1 // pred_region
      %53 = dma.done [#allocation3], 128
    $region25: #{tpu_custom_call.1} parent=1 // pred_fallthru
      _
    // Predicated region
    $region26: #{tpu_custom_call.1} parent=1 // pred_check
      _
    $region27: #{tpu_custom_call.1} parent=1 // pred_check_branch
      %55 = sbr.rel (0) target = $region29
    $region28: #{tpu_custom_call.1} parent=1 // pred_region
      %56 = dma.done [#allocation6], 512
    $region29: #{tpu_custom_call.1} parent=1 // pred_fallthru
      _
    // Predicated region
    $region30: #{tpu_custom_call.1} parent=1 // pred_check
      _
    $region31: #{tpu_custom_call.1} parent=1 // pred_check_branch
      %58 = sbr.rel (0) target = $region33
    $region32: #{tpu_custom_call.1} parent=1 // pred_region
      %59 = dma.done [#allocation6], 2048
    $region33: #{tpu_custom_call.1} parent=1 // pred_fallthru
      _
    %v60 = vld [vmem:[#allocation2] sm:$0xff]
    %v61 = vld [vmem:[#allocation5] sm:$0xff]
    %v62 = vld [vmem:[#allocation5 + $0x8] sm:$0xff]
    %v63 = vld [vmem:[#allocation5 + $0x10] sm:$0x3]
    %v64 = vld [vmem:[#allocation5 + $0x18] sm:$0x3]
    %vm65 = vcmask 80896
    %v67 = vsel %vm65, %v60, 0
    %vm69 = vcmask 1041408
    %v71 = vsel %vm69, %v63, 0
    %v74 = vsel %vm69, %v64, 0
    %76 = vmatprep.subr.mxu0 %v62
    %77 = vmatpush1.msra.mxu0 %v61
    %78 = vmatprep.subr.mxu0 %v74
    %79 = vmatpush1.msra.mxu0 %v71
    %80 = vmatprep.subr.mxu0 0.0
    %81 = vmatpush1.msra.mxu0 0.0
    %82 = vmatprep.subr.mxu0 0.0
    %83 = vmatpush1.msra.mxu0 0.0
    %84 = vmatprep.subr.mxu0 0.0
    %85 = vmatpush1.msra.mxu0 0.0
    %86 = vmatprep.subr.mxu0 0.0
    %87 = vmatpush1.msra.mxu0 0.0
    %88 = vmatprep.subr.mxu0 0.0
    %89 = vmatpush1.msra.mxu0 0.0
    %90 = vmatprep.subr.mxu0 0.0
    %91 = vmatpush1.msra.mxu0 0.0
    %92 = vmatprep.subr.mxu0 0.0
    %93 = vmatpush1.msra.mxu0 0.0
    %94 = vmatprep.subr.mxu0 0.0
    %95 = vmatpush1.msra.mxu0 0.0
    %96 = vmatprep.subr.mxu0 0.0
    %97 = vmatpush1.msra.mxu0 0.0
    %98 = vmatprep.subr.mxu0 0.0
    %99 = vmatpush1.msra.mxu0 0.0
    %100 = vmatprep.subr.mxu0 0.0
    %101 = vmatpush1.msra.mxu0 0.0
    %102 = vmatprep.subr.mxu0 0.0
    %103 = vmatpush1.msra.mxu0 0.0
    %104 = vmatprep.subr.mxu0 0.0
    %105 = vmatpush1.msra.mxu0 0.0
    %106 = vmatprep.subr.mxu0 0.0
    %107 = vmatpush1.msra.mxu0 0.0
    %108 = vmatprep.subr.mxu0 0.0
    %109 = vmatpush1.msra.mxu0 0.0
    %110 = vmatprep.subr.mxu0 0.0
    %111 = vmatpush1.msra.mxu0 0.0
    %112 = vmatprep.subr.mxu0 0.0
    %113 = vmatpush1.msra.mxu0 0.0
    %114 = vmatprep.subr.mxu0 0.0
    %115 = vmatpush1.msra.mxu0 0.0
    %116 = vmatprep.subr.mxu0 0.0
    %117 = vmatpush1.msra.mxu0 0.0
    %118 = vmatprep.subr.mxu0 0.0
    %119 = vmatpush1.msra.mxu0 0.0
    %120 = vmatprep.subr.mxu0 0.0
    %121 = vmatpush1.msra.mxu0 0.0
    %122 = vmatprep.subr.mxu0 0.0
    %123 = vmatpush1.msra.mxu0 0.0
    %124 = vmatprep.subr.mxu0 0.0
    %125 = vmatpush1.msra.mxu0 0.0
    %126 = vmatprep.subr.mxu0 0.0
    %127 = vmatpush1.msra.mxu0 0.0
    %128 = vmatprep.subr.mxu0 0.0
    %129 = vmatpush1.msra.mxu0 0.0
    %130 = vmatprep.subr.mxu0 0.0
    %131 = vmatpush1.msra.mxu0 0.0
    %132 = vmatprep.subr.mxu0 0.0
    %133 = vmatpush1.msra.mxu0 0.0
    %134 = vmatprep.subr.mxu0 0.0
    %135 = vmatpush1.msra.mxu0 0.0
    %136 = vmatprep.subr.mxu0 0.0
    %137 = vmatpush1.msra.mxu0 0.0
    %138 = vmatprep.subr.mxu0 0.0
    %139 = vmatpush1.msra.mxu0 0.0
    %140 = vmatprep.mubr.f32.mxu0 0.0
    %141 = vmatmul.mubr.f32.gmra.mrb[0].mxu0 %v67
    %v142 = vpop.f32.mrb[0].mxu0
    %v143 = vadd.f32 0.0, %v142
    %v144 = vpop.f32.mrb[0].mxu0
    %v145 = vadd.f32 0.0, %v144
    %146 = vdwg.mxu0
    %v147 = vld [vmem:[%s2] sm:$0x1]
    %v149 = vlaneseq
    %v150 = vshrl.u32 %v149, 7
    %v151 = vsub.s32 0, %v150
    %v152 = vrot.slane %v147, %v151
    %v154 = vadd.f32 %v145, %v152
    %v155 = vmul.f32 %v143, %v154
    %v156 = vld [vmem:[#allocation7] sm:$0xff]
    %v157 = vld [vmem:[#allocation7 + $0x8] sm:$0xff]
    %v158 = vld [vmem:[#allocation7 + $0x10] sm:$0xff]
    %v159 = vld [vmem:[#allocation7 + $0x18] sm:$0xff]
    %v160 = vld [vmem:[#allocation7 + $0x20] sm:$0xff]
    %v161 = vld [vmem:[#allocation7 + $0x28] sm:$0xff]
    %v162 = vld [vmem:[#allocation7 + $0x30] sm:$0xff]
    %v163 = vld [vmem:[#allocation7 + $0x38] sm:$0xff]
    %v164 = vld [vmem:[#allocation7 + $0x40] sm:$0xff]
    %v165 = vld [vmem:[#allocation7 + $0x48] sm:$0xff]
    %v166 = vld [vmem:[#allocation7 + $0x50] sm:$0xff]
    %v167 = vld [vmem:[#allocation7 + $0x58] sm:$0xff]
    %v168 = vld [vmem:[#allocation7 + $0x60] sm:$0xff]
    %v169 = vld [vmem:[#allocation7 + $0x68] sm:$0xff]
    %v170 = vld [vmem:[#allocation7 + $0x70] sm:$0xff]
    %v171 = vld [vmem:[#allocation7 + $0x78] sm:$0xff]
    %172 = vmatprep.subr.mxu0 0.0
    %173 = vmatpush1.msra.mxu0 %v156
    %174 = vmatprep.subr.mxu0 0.0
    %175 = vmatpush1.msra.mxu0 %v157
    %176 = vmatprep.subr.mxu0 0.0
    %177 = vmatpush1.msra.mxu0 %v158
    %178 = vmatprep.subr.mxu0 0.0
    %179 = vmatpush1.msra.mxu0 %v159
    %180 = vmatprep.subr.mxu0 0.0
    %181 = vmatpush1.msra.mxu0 %v160
    %182 = vmatprep.subr.mxu0 0.0
    %183 = vmatpush1.msra.mxu0 %v161
    %184 = vmatprep.subr.mxu0 0.0
    %185 = vmatpush1.msra.mxu0 %v162
    %186 = vmatprep.subr.mxu0 0.0
    %187 = vmatpush1.msra.mxu0 %v163
    %188 = vmatprep.subr.mxu0 0.0
    %189 = vmatpush1.msra.mxu0 %v164
    %190 = vmatprep.subr.mxu0 0.0
    %191 = vmatpush1.msra.mxu0 %v165
    %192 = vmatprep.subr.mxu0 0.0
    %193 = vmatpush1.msra.mxu0 %v166
    %194 = vmatprep.subr.mxu0 0.0
    %195 = vmatpush1.msra.mxu0 %v167
    %196 = vmatprep.subr.mxu0 0.0
    %197 = vmatpush1.msra.mxu0 %v168
    %198 = vmatprep.subr.mxu0 0.0
    %199 = vmatpush1.msra.mxu0 %v169
    %200 = vmatprep.subr.mxu0 0.0
    %201 = vmatpush1.msra.mxu0 %v170
    %202 = vmatprep.subr.mxu0 0.0
    %203 = vmatpush1.msra.mxu0 %v171
    %204 = vmatprep.subr.mxu0 0.0
    %205 = vmatpush1.msra.mxu0 0.0
    %206 = vmatprep.subr.mxu0 0.0
    %207 = vmatpush1.msra.mxu0 0.0
    %208 = vmatprep.subr.mxu0 0.0
    %209 = vmatpush1.msra.mxu0 0.0
    %210 = vmatprep.subr.mxu0 0.0
    %211 = vmatpush1.msra.mxu0 0.0
    %212 = vmatprep.subr.mxu0 0.0
    %213 = vmatpush1.msra.mxu0 0.0
    %214 = vmatprep.subr.mxu0 0.0
    %215 = vmatpush1.msra.mxu0 0.0
    %216 = vmatprep.subr.mxu0 0.0
    %217 = vmatpush1.msra.mxu0 0.0
    %218 = vmatprep.subr.mxu0 0.0
    %219 = vmatpush1.msra.mxu0 0.0
    %220 = vmatprep.subr.mxu0 0.0
    %221 = vmatpush1.msra.mxu0 0.0
    %222 = vmatprep.subr.mxu0 0.0
    %223 = vmatpush1.msra.mxu0 0.0
    %224 = vmatprep.subr.mxu0 0.0
    %225 = vmatpush1.msra.mxu0 0.0
    %226 = vmatprep.subr.mxu0 0.0
    %227 = vmatpush1.msra.mxu0 0.0
    %228 = vmatprep.subr.mxu0 0.0
    %229 = vmatpush1.msra.mxu0 0.0
    %230 = vmatprep.subr.mxu0 0.0
    %231 = vmatpush1.msra.mxu0 0.0
    %232 = vmatprep.subr.mxu0 0.0
    %233 = vmatpush1.msra.mxu0 0.0
    %234 = vmatprep.subr.mxu0 0.0
    %235 = vmatpush1.msra.mxu0 0.0
    %236 = vmatprep.mubr.f32.mxu0 0.0
    %237 = vmatmul.mubr.f32.gmra.mrb[0].mxu0 %v155
    %v238 = vpop.f32.mrb[0].mxu0
    %v239 = vadd.f32 0.0, %v238
    %v240 = vpop.f32.mrb[0].mxu0
    %241 = vdwg.mxu0
    %v242 = vld [vmem:[%s4] sm:$0x1]
    %v244 = vlaneseq
    %v245 = vshrl.u32 %v244, 7
    %v246 = vsub.s32 0, %v245
    %v247 = vrot.slane %v242, %v246
    %v249 = vadd.f32 %v239, %v247
    %vm250 = vcmask 121856
    %251 = vst.msk [vmem:[#allocation8] sm:$0xff] %vm250, %v249
    // Predicated region
    $region34: #{tpu_custom_call.1} parent=1 // pred_check
      _
    $region35: #{tpu_custom_call.1} parent=1 // pred_check_branch
      %253 = sbr.rel (0) target = $region37
    $region36: #{tpu_custom_call.1} parent=1 // pred_region
      %s255 = ssub.s32 128, 128
      %256 = vsyncadd [#allocation4], %s255
      %s258 = sshll.u32 [#allocation8], 4
      %s259 = int_to_ptr.vmem [resolvable:$true] %s258
      %261 = dma.vmem_to_hbm [thread:$0]  %s259, 128, %s5, [#allocation4]
    $region37: #{tpu_custom_call.1} parent=1 // pred_fallthru
      _
    // Predicated region
    $region38: #{tpu_custom_call.1} parent=1 // pred_check
      _
    $region39: #{tpu_custom_call.1} parent=1 // pred_check_branch
      %263 = sbr.rel (0) target = $region41
    $region40: #{tpu_custom_call.1} parent=1 // pred_region
      %264 = dma.done [#allocation4], 128
    $region41: #{tpu_custom_call.1} parent=1 // pred_fallthru
      _
    %265 = vsyncpa [#allocation3], 1
    %266 = vsyncpa [#allocation6], 1
    %267 = vsyncpa [#allocation4], 1

</llo_original>
